<compile_context>
chip_gen: v6e
topology: v6e:2x2x1
jax: 0.10.0
libtpu: 0.0.40
codegen_flags: <defaults>
</compile_context>

<pallas_src>
import functools

import jax
import jax.numpy as jnp
import numpy as np
from jax.experimental import pallas as pl
from jax.experimental.pallas import tpu as pltpu


def _round_up(x, m):
    return ((x + m - 1) // m) * m


def _pad2d(a, rows, cols):
    pr, pc = rows - a.shape[0], cols - a.shape[1]
    if pr == 0 and pc == 0:
        return a
    return jnp.pad(a, ((0, pr), (0, pc)))


@functools.lru_cache(maxsize=1)
def _vmem_capacity_bytes():
    """Per-core VMEM capacity; conservative (v7x) fallback if query fails."""
    try:
        info = pltpu.get_tpu_info()
        cap = getattr(info, "vmem_capacity_bytes", None)
        if cap:
            return int(cap)
    except Exception:
        pass
    return 64 * 1024 * 1024


def _vmem_estimate(block_m, din_p, hid_p, ncon_p, comp_bytes, out_bytes):
    """Worst-case per-step VMEM working set (assumes double-buffered I/O)."""
    return int(
        2 * block_m * din_p * comp_bytes                      # x tiles
        + 2 * (din_p * hid_p + hid_p * ncon_p) * comp_bytes   # W1, W2 (worst case)
        + 2 * (hid_p + ncon_p) * 4                            # biases (f32)
        + block_m * hid_p * (4 + comp_bytes)                  # h f32 + bf16 copy
        + block_m * ncon_p * 4                                # 2nd matmul f32 result
        + 2 * block_m * ncon_p * out_bytes                    # out tiles
    )


def _choose_block_m(batch_pad, din_p, hid_p, ncon_p, comp_bytes, out_bytes,
                    vmem_budget):
    """Largest bf16-friendly batch tile (multiple of 16, <=512) fitting VMEM."""
    bm = min(batch_pad, 512)            # batch_pad is already a multiple of 16
    while bm > 16 and _vmem_estimate(bm, din_p, hid_p, ncon_p,
                                     comp_bytes, out_bytes) > vmem_budget:
        bm = _round_up(bm // 2, 16)
    # TODO(synk): if din grows so large (huge one_hot concat) that even
    # block_m=16 does not fit, add a K-reduction grid axis over din with an
    # f32 accumulator scratch instead of keeping W1 fully resident.
    return bm


def _mlp_kernel(x_ref, w1_ref, b1_ref, w2_ref, b2_ref, out_ref):
    """Fused Linear -> ReLU -> Linear for one batch tile (lane-padded dims)."""
    h = jnp.dot(x_ref[...], w1_ref[...], preferred_element_type=jnp.float32)
    h = jnp.maximum(h + b1_ref[...], 0.0)            # bias + ReLU in f32
    # TODO(synk): nn.Dropout() is identity in eval mode; training-mode random
    # masking is intentionally not implemented here.
    h = h.astype(w2_ref.dtype)                       # back to bf16 for the MXU
    o = jnp.dot(h, w2_ref[...], preferred_element_type=jnp.float32)
    out_ref[...] = (o + b2_ref[...]).astype(out_ref.dtype)


def _mlp_pallas(xp, w1p, b1p, w2p, b2p, *, block_m, out_dtype, vmem_limit,
                single_buffer):
    b_pad, din_p = xp.shape
    hid_p = w1p.shape[1]
    ncon_p = w2p.shape[1]
    num_steps = pl.cdiv(b_pad, block_m)

    weight_mode = pl.Buffered(buffer_count=1) if single_buffer else None
    # Single-step grids gain nothing from double-buffering the I/O tiles.
    io_mode = (pl.Buffered(buffer_count=1)
               if (single_buffer and num_steps == 1) else None)

    def spec(shape, index_map, mode):
        if mode is None:
            return pl.BlockSpec(shape, index_map)
        return pl.BlockSpec(shape, index_map, pipeline_mode=mode)

    comp_bytes = xp.dtype.itemsize
    out_bytes = np.dtype(out_dtype).itemsize
    cost = pl.CostEstimate(
        flops=2 * b_pad * (din_p * hid_p + hid_p * ncon_p),
        transcendentals=0,
        bytes_accessed=(b_pad * din_p * comp_bytes
                        + (din_p * hid_p + hid_p * ncon_p) * comp_bytes
                        + (hid_p + ncon_p) * 4
                        + b_pad * ncon_p * out_bytes),
    )

    # TODO(synk): on v7x, real cross-TensorCore sharding of the batch axis
    # needs CORE_PARALLEL semantics or an explicit core_map over
    # create_tensorcore_mesh; plain "parallel" is kept here for portability.
    return pl.pallas_call(
        _mlp_kernel,
        out_shape=jax.ShapeDtypeStruct((b_pad, ncon_p), out_dtype),
        grid_spec=pltpu.PrefetchScalarGridSpec(
            num_scalar_prefetch=0,
            grid=(num_steps,),
            in_specs=[
                spec((block_m, din_p), lambda i: (i, 0), io_mode),     # x tile
                spec((din_p, hid_p), lambda i: (0, 0), weight_mode),   # W1
                spec((1, hid_p), lambda i: (0, 0), weight_mode),       # b1
                spec((hid_p, ncon_p), lambda i: (0, 0), weight_mode),  # W2
                spec((1, ncon_p), lambda i: (0, 0), weight_mode),      # b2
            ],
            out_specs=pl.BlockSpec((block_m, ncon_p), lambda i: (i, 0)),
        ),
        compiler_params=pltpu.CompilerParams(
            dimension_semantics=("parallel",),
            vmem_limit_bytes=vmem_limit,
        ),
        cost_estimate=cost,
    )(xp, w1p, b1p, w2p, b2p)


@functools.partial(jax.jit,
                   static_argnames=("block_m", "compute_dtype", "out_dtype",
                                    "vmem_limit", "single_buffer"))
def _mlp_jit(x, w1, b1, w2, b2, *, block_m, compute_dtype, out_dtype,
             vmem_limit, single_buffer):
    B, din = x.shape
    hidden = w1.shape[1]
    nconcept = w2.shape[1]

    # Lane-/sublane-dense padding: batch -> x16, din/hidden/nconcept -> x128.
    b_pad = _round_up(max(B, 1), 16)
    din_p = _round_up(din, 128)
    hid_p = _round_up(hidden, 128)
    ncon_p = _round_up(nconcept, 128)

    xp = _pad2d(x, b_pad, din_p).astype(compute_dtype)
    w1p = _pad2d(w1, din_p, hid_p).astype(compute_dtype)
    b1p = _pad2d(b1.reshape(1, -1), 1, hid_p).astype(jnp.float32)
    # TODO(synk): on v7x, fp8 weight storage (bf16 activations, f32 acc) would
    # halve resident weight VMEM if the accuracy budget allows.
    w2p = _pad2d(w2, hid_p, ncon_p).astype(compute_dtype)
    b2p = _pad2d(b2.reshape(1, -1), 1, ncon_p).astype(jnp.float32)

    out_padded = _mlp_pallas(xp, w1p, b1p, w2p, b2p, block_m=block_m,
                             out_dtype=out_dtype, vmem_limit=vmem_limit,
                             single_buffer=single_buffer)
    # Padded rows/columns are exact zeros; the slice lives inside this jit so
    # XLA fuses it with downstream consumers (no extra HBM round trip).
    return out_padded[:B, :nconcept]


def boia_conceptizer_mlp(x, w1, b1, w2, b2, *, block_m=None,
                         compute_dtype=jnp.bfloat16, out_dtype=None):
    """Run the fused MLP kernel on a 2-D input (B, din).

    Weights are stored pre-transposed as (in, out); biases as (out,) or
    (1, out) rows (transpose PyTorch's nn.Linear weights before passing).
    """
    B, din = x.shape
    hidden = w1.shape[1]
    nconcept = w2.shape[1]
    if out_dtype is None:
        out_dtype = x.dtype

    din_p = _round_up(din, 128)
    hid_p = _round_up(hidden, 128)
    ncon_p = _round_up(nconcept, 128)
    b_pad = _round_up(max(B, 1), 16)

    comp_bytes = np.dtype(compute_dtype).itemsize
    out_bytes = np.dtype(out_dtype).itemsize
    cap = _vmem_capacity_bytes()
    budget = int(cap * 0.55)            # headroom for compiler internal scratch
    if block_m is None:
        block_m = _choose_block_m(b_pad, din_p, hid_p, ncon_p,
                                  comp_bytes, out_bytes, budget)
    est = _vmem_estimate(int(block_m), din_p, hid_p, ncon_p,
                         comp_bytes, out_bytes)
    vmem_limit = int(min(cap - (4 << 20), max(16 << 20, 2 * est)))

    kwargs = dict(block_m=int(block_m), compute_dtype=compute_dtype,
                  out_dtype=out_dtype, vmem_limit=vmem_limit)
    try:
        return _mlp_jit(x, w1, b1, w2, b2, single_buffer=True, **kwargs)
    except Exception:
        # Fallback if pl.Buffered(1) pipeline_mode is unsupported on this
        # backend/version: default double buffering (numerically identical).
        return _mlp_jit(x, w1, b1, w2, b2, single_buffer=False, **kwargs)


def boia_conceptizer_forward(x, params, one_hot_w_SBWD=None, *, block_m=None,
                             compute_dtype=jnp.bfloat16):
    """Full module forward. Glue (flatten/concat/zeros-cat) stays in JAX."""
    w1, b1, w2, b2 = params
    if one_hot_w_SBWD is not None:
        one_hot_flat = one_hot_w_SBWD.reshape(one_hot_w_SBWD.shape[:-2] + (-1,))
        p = jnp.concatenate([x, one_hot_flat], axis=-1)
        lead = p.shape[:-1]
        p2 = p.reshape((-1, p.shape[-1]))
        logits_c = boia_conceptizer_mlp(p2, w1, b1, w2, b2, block_m=block_m,
                                        compute_dtype=compute_dtype)
        logits_c = logits_c.reshape(lead + (logits_c.shape[-1],))
        logits_c = logits_c[..., None]
        return jnp.concatenate([jnp.zeros_like(logits_c), logits_c], axis=-1)
    p = x.reshape((x.shape[0], -1))
    return boia_conceptizer_mlp(p, w1, b1, w2, b2, block_m=block_m,
                                compute_dtype=compute_dtype)


def init_params(key, din, nconcept, hidden_dim):
    """Deterministic synthetic parameters (shapes match nn.Linear layers)."""
    k1, k2, k3, k4 = jax.random.split(key, 4)
    # Stored as (in, out) = transpose of PyTorch's (out, in).
    w1 = jax.random.normal(k1, (din, hidden_dim), jnp.float32) * 0.05
    b1 = jax.random.normal(k2, (1, hidden_dim), jnp.float32) * 0.05
    w2 = jax.random.normal(k3, (hidden_dim, nconcept), jnp.float32) * 0.05
    b2 = jax.random.normal(k4, (1, nconcept), jnp.float32) * 0.05
    return w1, b1, w2, b2


if __name__ == "__main__":
    # Small shapes consistent with the module: batch=8, din=64, hidden=32,
    # nconcept=16. Input is already "encoder output" -> 2-D (B, din).
    B, DIN, HIDDEN, NCONCEPT = 8, 64, 32, 16

    key = jax.random.PRNGKey(0)
    kx, kp, ko, kb = jax.random.split(key, 4)
    x = jax.random.normal(kx, (B, DIN), jnp.float32)
    params = init_params(kp, DIN, NCONCEPT, HIDDEN)
    w1, b1, w2, b2 = params

    out = jax.block_until_ready(boia_conceptizer_forward(x, params))
    assert out.shape == (B, NCONCEPT), out.shape

    # Reference with matched bf16 operand precision (tight tolerance).
    xc, w1c, w2c = (a.astype(jnp.bfloat16) for a in (x, w1, w2))
    h_ref = jnp.maximum(
        jnp.dot(xc, w1c, preferred_element_type=jnp.float32) + b1, 0.0)
    ref_bf16 = jnp.dot(h_ref.astype(jnp.bfloat16), w2c,
                       preferred_element_type=jnp.float32) + b2
    assert jnp.allclose(out, ref_bf16, atol=1e-4, rtol=1e-4), "bf16 ref mismatch"

    # Full-f32 reference (loose tolerance; bounds the bf16 rounding error).
    ref_f32 = jnp.maximum(x @ w1 + b1, 0.0) @ w2 + b2
    assert jnp.allclose(out, ref_f32, atol=5e-2, rtol=5e-2), "f32 ref mismatch"

    # Multi-step grid + partial last tile: B=200 with explicit block_m=64.
    B3 = 200
    x3 = jax.random.normal(kb, (B3, DIN), jnp.float32)
    out3 = jax.block_until_ready(
        boia_conceptizer_mlp(x3, w1, b1, w2, b2, block_m=64))
    x3c = x3.astype(jnp.bfloat16)
    h3 = jnp.maximum(
        jnp.dot(x3c, w1c, preferred_element_type=jnp.float32) + b1, 0.0)
    ref3 = jnp.dot(h3.astype(jnp.bfloat16), w2c,
                   preferred_element_type=jnp.float32) + b2
    assert out3.shape == (B3, NCONCEPT), out3.shape
    assert jnp.allclose(out3, ref3, atol=1e-4, rtol=1e-4), "tiled path mismatch"

    # Smoke-test the one_hot_w_SBWD branch (concat + zeros-cat glue, ragged din).
    x2 = jax.random.normal(ko, (B, 4), jnp.float32)
    one_hot = jnp.eye(5, dtype=jnp.float32)[jnp.arange(B * 3) % 5].reshape(B, 3, 5)
    DIN2 = 4 + 3 * 5
    params2 = init_params(kp, DIN2, NCONCEPT, HIDDEN)
    out2 = jax.block_until_ready(
        boia_conceptizer_forward(x2, params2, one_hot_w_SBWD=one_hot))
    assert out2.shape == (B, NCONCEPT, 2), out2.shape
    w1b, b1b, w2b, b2b = params2
    p2 = jnp.concatenate([x2, one_hot.reshape(B, -1)], axis=-1)
    ref2 = jnp.maximum(p2 @ w1b + b1b, 0.0) @ w2b + b2b
    assert jnp.allclose(out2[..., 0], 0.0), "zeros half mismatch"
    assert jnp.allclose(out2[..., 1], ref2, atol=5e-2, rtol=5e-2), "one_hot path mismatch"

    print("KERNEL_OK")
</pallas_src>

<mosaic_0001>
module attributes {stable_mosaic.version = 11 : i64} {
  func.func @_mlp_kernel(%arg0: i32, %arg1: memref<16x128xbf16, #tpu.memory_space<vmem>>, %arg2: memref<128x128xbf16, #tpu.memory_space<vmem>>, %arg3: memref<1x128xf32, #tpu.memory_space<vmem>>, %arg4: memref<128x128xbf16, #tpu.memory_space<vmem>>, %arg5: memref<1x128xf32, #tpu.memory_space<vmem>>, %arg6: memref<16x128xf32, #tpu.memory_space<vmem>>) attributes {dimension_semantics = [#tpu.dimension_semantics<parallel>], iteration_bounds = array<i64: 1>, scalar_prefetch = 0 : i64, scratch_operands = 0 : i64, tpu.core_type = #tpu.core_type<tc>, window_params = [{pipeline_mode = #tpu.pipeline_mode<synchronous>, transform_indices = @transform_0, window_bounds = array<i64: 16, 128>}, {pipeline_mode = #tpu.pipeline_mode<synchronous>, transform_indices = @transform_1, window_bounds = array<i64: 128, 128>}, {pipeline_mode = #tpu.pipeline_mode<synchronous>, transform_indices = @transform_2, window_bounds = array<i64: 1, 128>}, {pipeline_mode = #tpu.pipeline_mode<synchronous>, transform_indices = @transform_3, window_bounds = array<i64: 128, 128>}, {pipeline_mode = #tpu.pipeline_mode<synchronous>, transform_indices = @transform_4, window_bounds = array<i64: 1, 128>}, {transform_indices = @transform_5, window_bounds = array<i64: 16, 128>}]} {
    %c0 = arith.constant 0 : index
    %c0_0 = arith.constant 0 : index
    %0 = vector.load %arg1[%c0, %c0_0] : memref<16x128xbf16, #tpu.memory_space<vmem>>, vector<16x128xbf16>
    %c0_1 = arith.constant 0 : index
    %c0_2 = arith.constant 0 : index
    %1 = vector.load %arg2[%c0_1, %c0_2] : memref<128x128xbf16, #tpu.memory_space<vmem>>, vector<128x128xbf16>
    %cst = arith.constant dense<0.000000e+00> : vector<16x128xf32>
    %2 = tpu.matmul %0, %1, %cst {dimension_numbers = #tpu.dot_dimension_numbers<[1], [0], [0], [1], [0, 0, 1, 1], [], []>} : vector<16x128xbf16>, vector<128x128xbf16>, vector<16x128xf32> -> vector<16x128xf32>
    %c0_3 = arith.constant 0 : index
    %c0_4 = arith.constant 0 : index
    %3 = vector.load %arg3[%c0_3, %c0_4] : memref<1x128xf32, #tpu.memory_space<vmem>>, vector<1x128xf32>
    %4 = vector.broadcast %3 : vector<1x128xf32> to vector<16x128xf32>
    %5 = arith.addf %2, %4 : vector<16x128xf32>
    %cst_5 = arith.constant 0.000000e+00 : f32
    %6 = vector.broadcast %cst_5 : f32 to vector<16x128xf32>
    %7 = arith.maximumf %5, %6 : vector<16x128xf32>
    %8 = arith.truncf %7 : vector<16x128xf32> to vector<16x128xbf16>
    %c0_6 = arith.constant 0 : index
    %c0_7 = arith.constant 0 : index
    %9 = vector.load %arg4[%c0_6, %c0_7] : memref<128x128xbf16, #tpu.memory_space<vmem>>, vector<128x128xbf16>
    %cst_8 = arith.constant dense<0.000000e+00> : vector<16x128xf32>
    %10 = tpu.matmul %8, %9, %cst_8 {dimension_numbers = #tpu.dot_dimension_numbers<[1], [0], [0], [1], [0, 0, 1, 1], [], []>} : vector<16x128xbf16>, vector<128x128xbf16>, vector<16x128xf32> -> vector<16x128xf32>
    %c0_9 = arith.constant 0 : index
    %c0_10 = arith.constant 0 : index
    %11 = vector.load %arg5[%c0_9, %c0_10] : memref<1x128xf32, #tpu.memory_space<vmem>>, vector<1x128xf32>
    %12 = vector.broadcast %11 : vector<1x128xf32> to vector<16x128xf32>
    %13 = arith.addf %10, %12 : vector<16x128xf32>
    %c0_11 = arith.constant 0 : index
    %c0_12 = arith.constant 0 : index
    %14 = vector.load %arg6[%c0_11, %c0_12] : memref<16x128xf32, #tpu.memory_space<vmem>>, vector<16x128xf32>
    tpu.vector_store %arg6[%c0_11, %c0_12], %13 {strides = array<i32>} : memref<16x128xf32, #tpu.memory_space<vmem>>, vector<16x128xf32>,
    return
  }
  func.func @transform_0(%arg0: i32) -> (i32, i32) {
    %c0_i32 = arith.constant 0 : i32
    %c0_i32_0 = arith.constant 0 : i32
    return %arg0, %c0_i32 : i32, i32
  }
  func.func @transform_1(%arg0: i32) -> (i32, i32) {
    %c0_i32 = arith.constant 0 : i32
    %c0_i32_0 = arith.constant 0 : i32
    %c0_i32_1 = arith.constant 0 : i32
    return %c0_i32, %c0_i32_0 : i32, i32
  }
  func.func @transform_2(%arg0: i32) -> (i32, i32) {
    %c0_i32 = arith.constant 0 : i32
    %c0_i32_0 = arith.constant 0 : i32
    %c0_i32_1 = arith.constant 0 : i32
    return %c0_i32, %c0_i32_0 : i32, i32
  }
  func.func @transform_3(%arg0: i32) -> (i32, i32) {
    %c0_i32 = arith.constant 0 : i32
    %c0_i32_0 = arith.constant 0 : i32
    %c0_i32_1 = arith.constant 0 : i32
    return %c0_i32, %c0_i32_0 : i32, i32
  }
  func.func @transform_4(%arg0: i32) -> (i32, i32) {
    %c0_i32 = arith.constant 0 : i32
    %c0_i32_0 = arith.constant 0 : i32
    %c0_i32_1 = arith.constant 0 : i32
    return %c0_i32, %c0_i32_0 : i32, i32
  }
  func.func @transform_5(%arg0: i32) -> (i32, i32) {
    %c0_i32 = arith.constant 0 : i32
    %c0_i32_0 = arith.constant 0 : i32
    return %arg0, %c0_i32 : i32, i32
  }
}

module attributes {stable_mosaic.version = 11 : i64} {
  func.func @_mlp_kernel(%arg0: i32, %arg1: memref<16x128xbf16, #tpu.memory_space<vmem>>, %arg2: memref<128x128xbf16, #tpu.memory_space<vmem>>, %arg3: memref<1x128xf32, #tpu.memory_space<vmem>>, %arg4: memref<128x128xbf16, #tpu.memory_space<vmem>>, %arg5: memref<1x128xf32, #tpu.memory_space<vmem>>, %arg6: memref<16x128xf32, #tpu.memory_space<vmem>>) attributes {dimension_semantics = [#tpu.dimension_semantics<parallel>], iteration_bounds = array<i64: 1>, scalar_prefetch = 0 : i64, scratch_operands = 0 : i64, tpu.core_type = #tpu.core_type<tc>, window_params = [{transform_indices = @transform_0, window_bounds = array<i64: 16, 128>}, {pipeline_mode = #tpu.pipeline_mode<synchronous>, transform_indices = @transform_1, window_bounds = array<i64: 128, 128>}, {pipeline_mode = #tpu.pipeline_mode<synchronous>, transform_indices = @transform_2, window_bounds = array<i64: 1, 128>}, {pipeline_mode = #tpu.pipeline_mode<synchronous>, transform_indices = @transform_3, window_bounds = array<i64: 128, 128>}, {pipeline_mode = #tpu.pipeline_mode<synchronous>, transform_indices = @transform_4, window_bounds = array<i64: 1, 128>}, {transform_indices = @transform_5, window_bounds = array<i64: 16, 128>}]} {
    %c0 = arith.constant 0 : index
    %c0_0 = arith.constant 0 : index
    %0 = vector.load %arg1[%c0, %c0_0] : memref<16x128xbf16, #tpu.memory_space<vmem>>, vector<16x128xbf16>
    %c0_1 = arith.constant 0 : index
    %c0_2 = arith.constant 0 : index
    %1 = vector.load %arg2[%c0_1, %c0_2] : memref<128x128xbf16, #tpu.memory_space<vmem>>, vector<128x128xbf16>
    %cst = arith.constant dense<0.000000e+00> : vector<16x128xf32>
    %2 = tpu.matmul %0, %1, %cst {dimension_numbers = #tpu.dot_dimension_numbers<[1], [0], [0], [1], [0, 0, 1, 1], [], []>} : vector<16x128xbf16>, vector<128x128xbf16>, vector<16x128xf32> -> vector<16x128xf32>
    %c0_3 = arith.constant 0 : index
    %c0_4 = arith.constant 0 : index
    %3 = vector.load %arg3[%c0_3, %c0_4] : memref<1x128xf32, #tpu.memory_space<vmem>>, vector<1x128xf32>
    %4 = vector.broadcast %3 : vector<1x128xf32> to vector<16x128xf32>
    %5 = arith.addf %2, %4 : vector<16x128xf32>
    %cst_5 = arith.constant 0.000000e+00 : f32
    %6 = vector.broadcast %cst_5 : f32 to vector<16x128xf32>
    %7 = arith.maximumf %5, %6 : vector<16x128xf32>
    %8 = arith.truncf %7 : vector<16x128xf32> to vector<16x128xbf16>
    %c0_6 = arith.constant 0 : index
    %c0_7 = arith.constant 0 : index
    %9 = vector.load %arg4[%c0_6, %c0_7] : memref<128x128xbf16, #tpu.memory_space<vmem>>, vector<128x128xbf16>
    %cst_8 = arith.constant dense<0.000000e+00> : vector<16x128xf32>
    %10 = tpu.matmul %8, %9, %cst_8 {dimension_numbers = #tpu.dot_dimension_numbers<[1], [0], [0], [1], [0, 0, 1, 1], [], []>} : vector<16x128xbf16>, vector<128x128xbf16>, vector<16x128xf32> -> vector<16x128xf32>
    %c0_9 = arith.constant 0 : index
    %c0_10 = arith.constant 0 : index
    %11 = vector.load %arg5[%c0_9, %c0_10] : memref<1x128xf32, #tpu.memory_space<vmem>>, vector<1x128xf32>
    %12 = vector.broadcast %11 : vector<1x128xf32> to vector<16x128xf32>
    %13 = arith.addf %10, %12 : vector<16x128xf32>
    %c0_11 = arith.constant 0 : index
    %c0_12 = arith.constant 0 : index
    %14 = vector.load %arg6[%c0_11, %c0_12] : memref<16x128xf32, #tpu.memory_space<vmem>>, vector<16x128xf32>
    tpu.vector_store %arg6[%c0_11, %c0_12], %13 {strides = array<i32>} : memref<16x128xf32, #tpu.memory_space<vmem>>, vector<16x128xf32>,
    return
  }
  func.func @transform_0(%arg0: i32) -> (i32, i32) {
    %c0_i32 = arith.constant 0 : i32
    %c0_i32_0 = arith.constant 0 : i32
    return %arg0, %c0_i32 : i32, i32
  }
  func.func @transform_1(%arg0: i32) -> (i32, i32) {
    %c0_i32 = arith.constant 0 : i32
    %c0_i32_0 = arith.constant 0 : i32
    %c0_i32_1 = arith.constant 0 : i32
    return %c0_i32, %c0_i32_0 : i32, i32
  }
  func.func @transform_2(%arg0: i32) -> (i32, i32) {
    %c0_i32 = arith.constant 0 : i32
    %c0_i32_0 = arith.constant 0 : i32
    %c0_i32_1 = arith.constant 0 : i32
    return %c0_i32, %c0_i32_0 : i32, i32
  }
  func.func @transform_3(%arg0: i32) -> (i32, i32) {
    %c0_i32 = arith.constant 0 : i32
    %c0_i32_0 = arith.constant 0 : i32
    %c0_i32_1 = arith.constant 0 : i32
    return %c0_i32, %c0_i32_0 : i32, i32
  }
  func.func @transform_4(%arg0: i32) -> (i32, i32) {
    %c0_i32 = arith.constant 0 : i32
    %c0_i32_0 = arith.constant 0 : i32
    %c0_i32_1 = arith.constant 0 : i32
    return %c0_i32, %c0_i32_0 : i32, i32
  }
  func.func @transform_5(%arg0: i32) -> (i32, i32) {
    %c0_i32 = arith.constant 0 : i32
    %c0_i32_0 = arith.constant 0 : i32
    return %arg0, %c0_i32 : i32, i32
  }
}

</mosaic_0001>

<llo_original>
// kernel: _mlp_jit.1
$region0: #{_mlp_jit.1}
  #allocation0 [shape = 'u32[]', space=smem, size = 0x4, offset = 0x4, fixed_abs, tag = 'smem constant byte address 0x4 - core index']
  #allocation1 [shape = 'u32[144,128]{1,0:T(1,128)}', space=vmem, size = 0x12000, scoped, tag = 'internal scratch']
  %s0 = inlined_call_operand.vmem [shape: bf16[16,128], index: 0, kind: input, shape index: {}]
  %s1 = inlined_call_operand.vmem [shape: bf16[128,128], index: 1, kind: input, shape index: {}]
  %s2 = inlined_call_operand.vmem [shape: f32[1,128], index: 2, kind: input, shape index: {}]
  %s3 = inlined_call_operand.vmem [shape: bf16[128,128], index: 3, kind: input, shape index: {}]
  %s4 = inlined_call_operand.vmem [shape: f32[1,128], index: 4, kind: input, shape index: {}]
  %s5 = inlined_call_operand.vmem [shape: f32[16,128], index: 5, kind: output, shape index: {}]
  %s6 = sld [smem:[#allocation0]]
  $region30: #{_mlp_jit.1} parent=0
    _
  %s8 = ssub.s32 1, %s6
  %s9 = scalar_select 0, %s8, %s6
  // Predicated region
  $region2: #{_mlp_jit.1} parent=0 // pred_check
    _
  $region3: #{_mlp_jit.1} parent=0 // pred_check_branch
    %11 = sbr.rel (0) target = $region5
  $region4: #{_mlp_jit.1} parent=0 // pred_region
    _
  $region5: #{_mlp_jit.1} parent=0 // pred_fallthru
    _
  // Predicated region
  $region6: #{_mlp_jit.1} parent=0 // pred_check
    _
  $region7: #{_mlp_jit.1} parent=0 // pred_check_branch
    %13 = sbr.rel (0) target = $region9
  $region8: #{_mlp_jit.1} parent=0 // pred_region
    _
  $region9: #{_mlp_jit.1} parent=0 // pred_fallthru
    _
  // Predicated region
  $region10: #{_mlp_jit.1} parent=0 // pred_check
    _
  $region11: #{_mlp_jit.1} parent=0 // pred_check_branch
    %15 = sbr.rel (0) target = $region13
  $region12: #{_mlp_jit.1} parent=0 // pred_region
    _
  $region13: #{_mlp_jit.1} parent=0 // pred_fallthru
    _
  // Predicated region
  $region14: #{_mlp_jit.1} parent=0 // pred_check
    _
  $region15: #{_mlp_jit.1} parent=0 // pred_check_branch
    %17 = sbr.rel (0) target = $region17
  $region16: #{_mlp_jit.1} parent=0 // pred_region
    _
  $region17: #{_mlp_jit.1} parent=0 // pred_fallthru
    _
  // Predicated region
  $region18: #{_mlp_jit.1} parent=0 // pred_check
    _
  $region19: #{_mlp_jit.1} parent=0 // pred_check_branch
    %19 = sbr.rel (0) target = $region21
  $region20: #{_mlp_jit.1} parent=0 // pred_region
    _
  $region21: #{_mlp_jit.1} parent=0 // pred_fallthru
    _
  %v21 = vld [vmem:[%s0] sm:$0xf]
  %v22 = vld [vmem:[%s0 + $0x4] sm:$0xf]
  %v23 = vld [vmem:[%s1] sm:$0xf]
  %v24 = vld [vmem:[%s1 + $0x4] sm:$0xf]
  %v25 = vld [vmem:[%s1 + $0x8] sm:$0xf]
  %v26 = vld [vmem:[%s1 + $0xc] sm:$0xf]
  %v27 = vld [vmem:[%s1 + $0x10] sm:$0xf]
  %v28 = vld [vmem:[%s1 + $0x14] sm:$0xf]
  %v29 = vld [vmem:[%s1 + $0x18] sm:$0xf]
  %v30 = vld [vmem:[%s1 + $0x1c] sm:$0xf]
  %v31 = vld [vmem:[%s1 + $0x20] sm:$0xf]
  %v32 = vld [vmem:[%s1 + $0x24] sm:$0xf]
  %v33 = vld [vmem:[%s1 + $0x28] sm:$0xf]
  %v34 = vld [vmem:[%s1 + $0x2c] sm:$0xf]
  %v35 = vld [vmem:[%s1 + $0x30] sm:$0xf]
  %v36 = vld [vmem:[%s1 + $0x34] sm:$0xf]
  %v37 = vld [vmem:[%s1 + $0x38] sm:$0xf]
  %v38 = vld [vmem:[%s1 + $0x3c] sm:$0xf]
  %v39 = vld [vmem:[%s2] sm:$0x1]
  %v41 = vlaneseq
  %v42 = vshrl.u32 %v41, 7
  %v43 = vsub.s32 0, %v42
  %v44 = vrot.slane %v39, %v43
  %v48 = vunpack.c.l.b16 %v21
  %v49 = vunpack.c.l.b16 %v22
  %v50 = vpack.c.b16 %v49, %v48
  %v68 = vunpack.c.l.b16 %v23
  %v69 = vunpack.c.l.b16 %v24
  %v70 = vunpack.c.l.b16 %v25
  %v71 = vunpack.c.l.b16 %v26
  %v72 = vunpack.c.l.b16 %v27
  %v73 = vunpack.c.l.b16 %v28
  %v74 = vunpack.c.l.b16 %v29
  %v75 = vunpack.c.l.b16 %v30
  %v76 = vunpack.c.l.b16 %v31
  %v77 = vunpack.c.l.b16 %v32
  %v78 = vunpack.c.l.b16 %v33
  %v79 = vunpack.c.l.b16 %v34
  %v80 = vunpack.c.l.b16 %v35
  %v81 = vunpack.c.l.b16 %v36
  %v82 = vunpack.c.l.b16 %v37
  %v83 = vunpack.c.l.b16 %v38
  %v84 = vpack.c.b16 %v69, %v68
  %v85 = vpack.c.b16 %v71, %v70
  %v86 = vpack.c.b16 %v73, %v72
  %v87 = vpack.c.b16 %v75, %v74
  %v88 = vpack.c.b16 %v77, %v76
  %v89 = vpack.c.b16 %v79, %v78
  %v90 = vpack.c.b16 %v81, %v80
  %v91 = vpack.c.b16 %v83, %v82
  %100 = vmatprep.subr.bf16.mxu0 0
  %101 = vmatpush1.bf16.msra.mxu0 %v91
  %102 = vmatprep.subr.bf16.mxu0 0
  %103 = vmatpush1.bf16.msra.mxu0 %v90
  %104 = vmatprep.subr.bf16.mxu0 0
  %105 = vmatpush1.bf16.msra.mxu0 %v89
  %106 = vmatprep.subr.bf16.mxu0 0
  %107 = vmatpush1.bf16.msra.mxu0 %v88
  %108 = vmatprep.subr.bf16.mxu0 0
  %109 = vmatpush1.bf16.msra.mxu0 %v87
  %110 = vmatprep.subr.bf16.mxu0 0
  %111 = vmatpush1.bf16.msra.mxu0 %v86
  %112 = vmatprep.subr.bf16.mxu0 0
  %113 = vmatpush1.bf16.msra.mxu0 %v85
  %114 = vmatprep.subr.bf16.mxu0 0
  %115 = vmatpush1.bf16.msra.mxu0 %v84
  %116 = vmatprep.subr.bf16.mxu0 0
  %117 = vmatpush2.bf16.msra.mxu0 0
  %118 = vmatprep.subr.bf16.mxu0 0
  %119 = vmatpush2.bf16.msra.mxu0 0
  %120 = vmatprep.subr.bf16.mxu0 0
  %121 = vmatpush2.bf16.msra.mxu0 0
  %122 = vmatprep.subr.bf16.mxu0 0
  %123 = vmatpush2.bf16.msra.mxu0 0
  %124 = vmatprep.subr.bf16.mxu0 0
  %125 = vmatpush2.bf16.msra.mxu0 0
  %126 = vmatprep.subr.bf16.mxu0 0
  %127 = vmatpush2.bf16.msra.mxu0 0
  %128 = vmatprep.subr.bf16.mxu0 0
  %129 = vmatpush2.bf16.msra.mxu0 0
  %130 = vmatprep.subr.bf16.mxu0 0
  %131 = vmatpush2.bf16.msra.mxu0 0
  %132 = vmatprep.mubr.bf16.mxu0 0
  %133 = vmatmul.mubr.bf16.gmra.mxu0 %v50
  %v134 = vpop.f32.mrf.mxu0
  %v135 = vadd.f32 %v44, %v134
  %v136 = vpop.f32.mrf.mxu0
  %v137 = vpop.f32.mrf.mxu0
  %v138 = vadd.f32 %v44, %v137
  %v139 = vpop.f32.mrf.mxu0
  %140 = vdwg.mxu0
  %v141 = vmax.f32 %v135, 0.0
  %v142 = vmax.f32 %v138, 0.0
  %v143 = vpack.c.bf16 %v142, %v141
  %v144 = vld [vmem:[%s3] sm:$0xf]
  %v145 = vld [vmem:[%s3 + $0x4] sm:$0xf]
  %v146 = vld [vmem:[%s3 + $0x8] sm:$0xf]
  %v147 = vld [vmem:[%s3 + $0xc] sm:$0xf]
  %v148 = vld [vmem:[%s3 + $0x10] sm:$0xf]
  %v149 = vld [vmem:[%s3 + $0x14] sm:$0xf]
  %v150 = vld [vmem:[%s3 + $0x18] sm:$0xf]
  %v151 = vld [vmem:[%s3 + $0x1c] sm:$0xf]
  %v152 = vld [vmem:[%s3 + $0x20] sm:$0xf]
  %v153 = vld [vmem:[%s3 + $0x24] sm:$0xf]
  %v154 = vld [vmem:[%s3 + $0x28] sm:$0xf]
  %v155 = vld [vmem:[%s3 + $0x2c] sm:$0xf]
  %v156 = vld [vmem:[%s3 + $0x30] sm:$0xf]
  %v157 = vld [vmem:[%s3 + $0x34] sm:$0xf]
  %v158 = vld [vmem:[%s3 + $0x38] sm:$0xf]
  %v159 = vld [vmem:[%s3 + $0x3c] sm:$0xf]
  %v160 = vld [vmem:[%s4] sm:$0x1]
  %v162 = vlaneseq
  %v163 = vshrl.u32 %v162, 7
  %v164 = vsub.s32 0, %v163
  %v165 = vrot.slane %v160, %v164
  %v183 = vunpack.c.l.b16 %v144
  %v184 = vunpack.c.l.b16 %v145
  %v185 = vunpack.c.l.b16 %v146
  %v186 = vunpack.c.l.b16 %v147
  %v187 = vunpack.c.l.b16 %v148
  %v188 = vunpack.c.l.b16 %v149
  %v189 = vunpack.c.l.b16 %v150
  %v190 = vunpack.c.l.b16 %v151
  %v191 = vunpack.c.l.b16 %v152
  %v192 = vunpack.c.l.b16 %v153
  %v193 = vunpack.c.l.b16 %v154
  %v194 = vunpack.c.l.b16 %v155
  %v195 = vunpack.c.l.b16 %v156
  %v196 = vunpack.c.l.b16 %v157
  %v197 = vunpack.c.l.b16 %v158
  %v198 = vunpack.c.l.b16 %v159
  %v199 = vpack.c.b16 %v184, %v183
  %v200 = vpack.c.b16 %v186, %v185
  %v201 = vpack.c.b16 %v188, %v187
  %v202 = vpack.c.b16 %v190, %v189
  %v203 = vpack.c.b16 %v192, %v191
  %v204 = vpack.c.b16 %v194, %v193
  %v205 = vpack.c.b16 %v196, %v195
  %v206 = vpack.c.b16 %v198, %v197
  %215 = vmatprep.subr.bf16.mxu0 0
  %216 = vmatpush1.bf16.msra.mxu0 %v206
  %217 = vmatprep.subr.bf16.mxu0 0
  %218 = vmatpush1.bf16.msra.mxu0 %v205
  %219 = vmatprep.subr.bf16.mxu0 0
  %220 = vmatpush1.bf16.msra.mxu0 %v204
  %221 = vmatprep.subr.bf16.mxu0 0
  %222 = vmatpush1.bf16.msra.mxu0 %v203
  %223 = vmatprep.subr.bf16.mxu0 0
  %224 = vmatpush1.bf16.msra.mxu0 %v202
  %225 = vmatprep.subr.bf16.mxu0 0
  %226 = vmatpush1.bf16.msra.mxu0 %v201
  %227 = vmatprep.subr.bf16.mxu0 0
  %228 = vmatpush1.bf16.msra.mxu0 %v200
  %229 = vmatprep.subr.bf16.mxu0 0
  %230 = vmatpush1.bf16.msra.mxu0 %v199
  %231 = vmatprep.subr.bf16.mxu0 0
  %232 = vmatpush2.bf16.msra.mxu0 0
  %233 = vmatprep.subr.bf16.mxu0 0
  %234 = vmatpush2.bf16.msra.mxu0 0
  %235 = vmatprep.subr.bf16.mxu0 0
  %236 = vmatpush2.bf16.msra.mxu0 0
  %237 = vmatprep.subr.bf16.mxu0 0
  %238 = vmatpush2.bf16.msra.mxu0 0
  %239 = vmatprep.subr.bf16.mxu0 0
  %240 = vmatpush2.bf16.msra.mxu0 0
  %241 = vmatprep.subr.bf16.mxu0 0
  %242 = vmatpush2.bf16.msra.mxu0 0
  %243 = vmatprep.subr.bf16.mxu0 0
  %244 = vmatpush2.bf16.msra.mxu0 0
  %245 = vmatprep.subr.bf16.mxu0 0
  %246 = vmatpush2.bf16.msra.mxu0 0
  %247 = vmatprep.mubr.bf16.mxu0 0
  %248 = vmatmul.mubr.bf16.gmra.mxu0 %v143
  %v249 = vpop.f32.mrf.mxu0
  %v250 = vadd.f32 %v165, %v249
  %v251 = vpop.f32.mrf.mxu0
  %v252 = vpop.f32.mrf.mxu0
  %v253 = vadd.f32 %v165, %v252
  %v254 = vpop.f32.mrf.mxu0
  %255 = vdwg.mxu0
  %256 = vst [vmem:[%s5] sm:$0xff] %v250
  %257 = vst [vmem:[%s5 + $0x8] sm:$0xff] %v253
  // Predicated region
  $region22: #{_mlp_jit.1} parent=0 // pred_check
    _
  $region23: #{_mlp_jit.1} parent=0 // pred_check_branch
    %259 = sbr.rel (0) target = $region25
  $region24: #{_mlp_jit.1} parent=0 // pred_region
    _
  $region25: #{_mlp_jit.1} parent=0 // pred_fallthru
    _
  // Predicated region
  $region26: #{_mlp_jit.1} parent=0 // pred_check
    _
  $region27: #{_mlp_jit.1} parent=0 // pred_check_branch
    %261 = sbr.rel (0) target = $region29
  $region28: #{_mlp_jit.1} parent=0 // pred_region
    _
  $region29: #{_mlp_jit.1} parent=0 // pred_fallthru
    _

// kernel: _mlp_jit.1
$region0: #{_mlp_jit.1}
  #allocation0 [shape = 'u32[]', space=smem, size = 0x4, offset = 0x4, fixed_abs, tag = 'smem constant byte address 0x4 - core index']
  #allocation1 [shape = 'u32[144,128]{1,0:T(1,128)}', space=vmem, size = 0x12000, scoped, tag = 'internal scratch']
  %s0 = inlined_call_operand.vmem [shape: bf16[16,128], index: 0, kind: input, shape index: {}]
  %s1 = inlined_call_operand.vmem [shape: bf16[128,128], index: 1, kind: input, shape index: {}]
  %s2 = inlined_call_operand.vmem [shape: f32[1,128], index: 2, kind: input, shape index: {}]
  %s3 = inlined_call_operand.vmem [shape: bf16[128,128], index: 3, kind: input, shape index: {}]
  %s4 = inlined_call_operand.vmem [shape: f32[1,128], index: 4, kind: input, shape index: {}]
  %s5 = inlined_call_operand.vmem [shape: f32[16,128], index: 5, kind: output, shape index: {}]
  %s6 = sld [smem:[#allocation0]]
  $region30: #{_mlp_jit.1} parent=0
    _
  %s8 = ssub.s32 1, %s6
  %s9 = scalar_select 0, %s8, %s6
  // Predicated region
  $region2: #{_mlp_jit.1} parent=0 // pred_check
    _
  $region3: #{_mlp_jit.1} parent=0 // pred_check_branch
    %11 = sbr.rel (0) target = $region5
  $region4: #{_mlp_jit.1} parent=0 // pred_region
    _
  $region5: #{_mlp_jit.1} parent=0 // pred_fallthru
    _
  // Predicated region
  $region6: #{_mlp_jit.1} parent=0 // pred_check
    _
  $region7: #{_mlp_jit.1} parent=0 // pred_check_branch
    %13 = sbr.rel (0) target = $region9
  $region8: #{_mlp_jit.1} parent=0 // pred_region
    _
  $region9: #{_mlp_jit.1} parent=0 // pred_fallthru
    _
  // Predicated region
  $region10: #{_mlp_jit.1} parent=0 // pred_check
    _
  $region11: #{_mlp_jit.1} parent=0 // pred_check_branch
    %15 = sbr.rel (0) target = $region13
  $region12: #{_mlp_jit.1} parent=0 // pred_region
    _
  $region13: #{_mlp_jit.1} parent=0 // pred_fallthru
    _
  // Predicated region
  $region14: #{_mlp_jit.1} parent=0 // pred_check
    _
  $region15: #{_mlp_jit.1} parent=0 // pred_check_branch
    %17 = sbr.rel (0) target = $region17
  $region16: #{_mlp_jit.1} parent=0 // pred_region
    _
  $region17: #{_mlp_jit.1} parent=0 // pred_fallthru
    _
  // Predicated region
  $region18: #{_mlp_jit.1} parent=0 // pred_check
    _
  $region19: #{_mlp_jit.1} parent=0 // pred_check_branch
    %19 = sbr.rel (0) target = $region21
  $region20: #{_mlp_jit.1} parent=0 // pred_region
    _
  $region21: #{_mlp_jit.1} parent=0 // pred_fallthru
    _
  %v21 = vld [vmem:[%s0] sm:$0xf]
  %v22 = vld [vmem:[%s0 + $0x4] sm:$0xf]
  %v23 = vld [vmem:[%s1] sm:$0xf]
  %v24 = vld [vmem:[%s1 + $0x4] sm:$0xf]
  %v25 = vld [vmem:[%s1 + $0x8] sm:$0xf]
  %v26 = vld [vmem:[%s1 + $0xc] sm:$0xf]
  %v27 = vld [vmem:[%s1 + $0x10] sm:$0xf]
  %v28 = vld [vmem:[%s1 + $0x14] sm:$0xf]
  %v29 = vld [vmem:[%s1 + $0x18] sm:$0xf]
  %v30 = vld [vmem:[%s1 + $0x1c] sm:$0xf]
  %v31 = vld [vmem:[%s1 + $0x20] sm:$0xf]
  %v32 = vld [vmem:[%s1 + $0x24] sm:$0xf]
  %v33 = vld [vmem:[%s1 + $0x28] sm:$0xf]
  %v34 = vld [vmem:[%s1 + $0x2c] sm:$0xf]
  %v35 = vld [vmem:[%s1 + $0x30] sm:$0xf]
  %v36 = vld [vmem:[%s1 + $0x34] sm:$0xf]
  %v37 = vld [vmem:[%s1 + $0x38] sm:$0xf]
  %v38 = vld [vmem:[%s1 + $0x3c] sm:$0xf]
  %v39 = vld [vmem:[%s2] sm:$0x1]
  %v41 = vlaneseq
  %v42 = vshrl.u32 %v41, 7
  %v43 = vsub.s32 0, %v42
  %v44 = vrot.slane %v39, %v43
  %v48 = vunpack.c.l.b16 %v21
  %v49 = vunpack.c.l.b16 %v22
  %v50 = vpack.c.b16 %v49, %v48
  %v68 = vunpack.c.l.b16 %v23
  %v69 = vunpack.c.l.b16 %v24
  %v70 = vunpack.c.l.b16 %v25
  %v71 = vunpack.c.l.b16 %v26
  %v72 = vunpack.c.l.b16 %v27
  %v73 = vunpack.c.l.b16 %v28
  %v74 = vunpack.c.l.b16 %v29
  %v75 = vunpack.c.l.b16 %v30
  %v76 = vunpack.c.l.b16 %v31
  %v77 = vunpack.c.l.b16 %v32
  %v78 = vunpack.c.l.b16 %v33
  %v79 = vunpack.c.l.b16 %v34
  %v80 = vunpack.c.l.b16 %v35
  %v81 = vunpack.c.l.b16 %v36
  %v82 = vunpack.c.l.b16 %v37
  %v83 = vunpack.c.l.b16 %v38
  %v84 = vpack.c.b16 %v69, %v68
  %v85 = vpack.c.b16 %v71, %v70
  %v86 = vpack.c.b16 %v73, %v72
  %v87 = vpack.c.b16 %v75, %v74
  %v88 = vpack.c.b16 %v77, %v76
  %v89 = vpack.c.b16 %v79, %v78
  %v90 = vpack.c.b16 %v81, %v80
  %v91 = vpack.c.b16 %v83, %v82
  %100 = vmatprep.subr.bf16.mxu0 0
  %101 = vmatpush1.bf16.msra.mxu0 %v91
  %102 = vmatprep.subr.bf16.mxu0 0
  %103 = vmatpush1.bf16.msra.mxu0 %v90
  %104 = vmatprep.subr.bf16.mxu0 0
  %105 = vmatpush1.bf16.msra.mxu0 %v89
  %106 = vmatprep.subr.bf16.mxu0 0
  %107 = vmatpush1.bf16.msra.mxu0 %v88
  %108 = vmatprep.subr.bf16.mxu0 0
  %109 = vmatpush1.bf16.msra.mxu0 %v87
  %110 = vmatprep.subr.bf16.mxu0 0
  %111 = vmatpush1.bf16.msra.mxu0 %v86
  %112 = vmatprep.subr.bf16.mxu0 0
  %113 = vmatpush1.bf16.msra.mxu0 %v85
  %114 = vmatprep.subr.bf16.mxu0 0
  %115 = vmatpush1.bf16.msra.mxu0 %v84
  %116 = vmatprep.subr.bf16.mxu0 0
  %117 = vmatpush2.bf16.msra.mxu0 0
  %118 = vmatprep.subr.bf16.mxu0 0
  %119 = vmatpush2.bf16.msra.mxu0 0
  %120 = vmatprep.subr.bf16.mxu0 0
  %121 = vmatpush2.bf16.msra.mxu0 0
  %122 = vmatprep.subr.bf16.mxu0 0
  %123 = vmatpush2.bf16.msra.mxu0 0
  %124 = vmatprep.subr.bf16.mxu0 0
  %125 = vmatpush2.bf16.msra.mxu0 0
  %126 = vmatprep.subr.bf16.mxu0 0
  %127 = vmatpush2.bf16.msra.mxu0 0
  %128 = vmatprep.subr.bf16.mxu0 0
  %129 = vmatpush2.bf16.msra.mxu0 0
  %130 = vmatprep.subr.bf16.mxu0 0
  %131 = vmatpush2.bf16.msra.mxu0 0
  %132 = vmatprep.mubr.bf16.mxu0 0
  %133 = vmatmul.mubr.bf16.gmra.mxu0 %v50
  %v134 = vpop.f32.mrf.mxu0
  %v135 = vadd.f32 %v44, %v134
  %v136 = vpop.f32.mrf.mxu0
  %v137 = vpop.f32.mrf.mxu0
  %v138 = vadd.f32 %v44, %v137
  %v139 = vpop.f32.mrf.mxu0
  %140 = vdwg.mxu0
  %v141 = vmax.f32 %v135, 0.0
  %v142 = vmax.f32 %v138, 0.0
  %v143 = vpack.c.bf16 %v142, %v141
  %v144 = vld [vmem:[%s3] sm:$0xf]
  %v145 = vld [vmem:[%s3 + $0x4] sm:$0xf]
  %v146 = vld [vmem:[%s3 + $0x8] sm:$0xf]
  %v147 = vld [vmem:[%s3 + $0xc] sm:$0xf]
  %v148 = vld [vmem:[%s3 + $0x10] sm:$0xf]
  %v149 = vld [vmem:[%s3 + $0x14] sm:$0xf]
  %v150 = vld [vmem:[%s3 + $0x18] sm:$0xf]
  %v151 = vld [vmem:[%s3 + $0x1c] sm:$0xf]
  %v152 = vld [vmem:[%s3 + $0x20] sm:$0xf]
  %v153 = vld [vmem:[%s3 + $0x24] sm:$0xf]
  %v154 = vld [vmem:[%s3 + $0x28] sm:$0xf]
  %v155 = vld [vmem:[%s3 + $0x2c] sm:$0xf]
  %v156 = vld [vmem:[%s3 + $0x30] sm:$0xf]
  %v157 = vld [vmem:[%s3 + $0x34] sm:$0xf]
  %v158 = vld [vmem:[%s3 + $0x38] sm:$0xf]
  %v159 = vld [vmem:[%s3 + $0x3c] sm:$0xf]
  %v160 = vld [vmem:[%s4] sm:$0x1]
  %v162 = vlaneseq
  %v163 = vshrl.u32 %v162, 7
  %v164 = vsub.s32 0, %v163
  %v165 = vrot.slane %v160, %v164
  %v183 = vunpack.c.l.b16 %v144
  %v184 = vunpack.c.l.b16 %v145
  %v185 = vunpack.c.l.b16 %v146
  %v186 = vunpack.c.l.b16 %v147
  %v187 = vunpack.c.l.b16 %v148
  %v188 = vunpack.c.l.b16 %v149
  %v189 = vunpack.c.l.b16 %v150
  %v190 = vunpack.c.l.b16 %v151
  %v191 = vunpack.c.l.b16 %v152
  %v192 = vunpack.c.l.b16 %v153
  %v193 = vunpack.c.l.b16 %v154
  %v194 = vunpack.c.l.b16 %v155
  %v195 = vunpack.c.l.b16 %v156
  %v196 = vunpack.c.l.b16 %v157
  %v197 = vunpack.c.l.b16 %v158
  %v198 = vunpack.c.l.b16 %v159
  %v199 = vpack.c.b16 %v184, %v183
  %v200 = vpack.c.b16 %v186, %v185
  %v201 = vpack.c.b16 %v188, %v187
  %v202 = vpack.c.b16 %v190, %v189
  %v203 = vpack.c.b16 %v192, %v191
  %v204 = vpack.c.b16 %v194, %v193
  %v205 = vpack.c.b16 %v196, %v195
  %v206 = vpack.c.b16 %v198, %v197
  %215 = vmatprep.subr.bf16.mxu0 0
  %216 = vmatpush1.bf16.msra.mxu0 %v206
  %217 = vmatprep.subr.bf16.mxu0 0
  %218 = vmatpush1.bf16.msra.mxu0 %v205
  %219 = vmatprep.subr.bf16.mxu0 0
  %220 = vmatpush1.bf16.msra.mxu0 %v204
  %221 = vmatprep.subr.bf16.mxu0 0
  %222 = vmatpush1.bf16.msra.mxu0 %v203
  %223 = vmatprep.subr.bf16.mxu0 0
  %224 = vmatpush1.bf16.msra.mxu0 %v202
  %225 = vmatprep.subr.bf16.mxu0 0
  %226 = vmatpush1.bf16.msra.mxu0 %v201
  %227 = vmatprep.subr.bf16.mxu0 0
  %228 = vmatpush1.bf16.msra.mxu0 %v200
  %229 = vmatprep.subr.bf16.mxu0 0
  %230 = vmatpush1.bf16.msra.mxu0 %v199
  %231 = vmatprep.subr.bf16.mxu0 0
  %232 = vmatpush2.bf16.msra.mxu0 0
  %233 = vmatprep.subr.bf16.mxu0 0
  %234 = vmatpush2.bf16.msra.mxu0 0
  %235 = vmatprep.subr.bf16.mxu0 0
  %236 = vmatpush2.bf16.msra.mxu0 0
  %237 = vmatprep.subr.bf16.mxu0 0
  %238 = vmatpush2.bf16.msra.mxu0 0
  %239 = vmatprep.subr.bf16.mxu0 0
  %240 = vmatpush2.bf16.msra.mxu0 0
  %241 = vmatprep.subr.bf16.mxu0 0
  %242 = vmatpush2.bf16.msra.mxu0 0
  %243 = vmatprep.subr.bf16.mxu0 0
  %244 = vmatpush2.bf16.msra.mxu0 0
  %245 = vmatprep.subr.bf16.mxu0 0
  %246 = vmatpush2.bf16.msra.mxu0 0
  %247 = vmatprep.mubr.bf16.mxu0 0
  %248 = vmatmul.mubr.bf16.gmra.mxu0 %v143
  %v249 = vpop.f32.mrf.mxu0
  %v250 = vadd.f32 %v165, %v249
  %v251 = vpop.f32.mrf.mxu0
  %v252 = vpop.f32.mrf.mxu0
  %v253 = vadd.f32 %v165, %v252
  %v254 = vpop.f32.mrf.mxu0
  %255 = vdwg.mxu0
  %256 = vst [vmem:[%s5] sm:$0xff] %v250
  %257 = vst [vmem:[%s5 + $0x8] sm:$0xff] %v253
  // Predicated region
  $region22: #{_mlp_jit.1} parent=0 // pred_check
    _
  $region23: #{_mlp_jit.1} parent=0 // pred_check_branch
    %259 = sbr.rel (0) target = $region25
  $region24: #{_mlp_jit.1} parent=0 // pred_region
    _
  $region25: #{_mlp_jit.1} parent=0 // pred_fallthru
    _
  // Predicated region
  $region26: #{_mlp_jit.1} parent=0 // pred_check
    _
  $region27: #{_mlp_jit.1} parent=0 // pred_check_branch
    %261 = sbr.rel (0) target = $region29
  $region28: #{_mlp_jit.1} parent=0 // pred_region
    _
  $region29: #{_mlp_jit.1} parent=0 // pred_fallthru
    _

</llo_original>
